<compile_context>
chip_gen: v6e
topology: v6e:2x2x1
jax: 0.10.0
libtpu: 0.0.40
codegen_flags: <defaults>
</compile_context>

<pallas_src>
import jax
import jax.numpy as jnp
from jax.experimental import pallas as pl
from jax.experimental.pallas import tpu as pltpu


def _attention1_kernel(x1_ref, x2_ref, w_ref, b_ref, o_ref):
    # f32 elementwise add on the VPU (v5e-safe), bf16 operands into the MXU in
    # canonical (M,K)x(K,N) form, f32 accumulation, f32 bias add, single cast on
    # the final store.
    s = x1_ref[...] + x2_ref[...]                            # (bb, F_in)  f32
    acc = jnp.dot(s.astype(w_ref.dtype), w_ref[...],         # (F_in, F_out) resident bf16
                  preferred_element_type=jnp.float32)        # (bb, F_out) f32
    o_ref[...] = (acc + b_ref[...]).astype(o_ref.dtype)


def prepare_attention1_params(weight, bias, compute_dtype=jnp.bfloat16):
    """One-time (init-time) packing of the nn.Linear params.

    - transposes the PyTorch (out, in) weight ONCE to canonical (in, out)
    - stores the resident weight in bf16 (MXU operand dtype); bias stays f32
    """
    w_t = jnp.asarray(weight).T.astype(compute_dtype)        # (F_in, F_out)
    b_row = jnp.asarray(bias).astype(jnp.float32).reshape(1, -1)
    return w_t, b_row


def _round_up(x, m):
    return ((x + m - 1) // m) * m


def _pick_block_rows(B, block_b):
    """Rows per grid block.

    - a block whose row count equals B (full array dim) or is a multiple of 8
      satisfies the (8, 128) block rule (the lane dim is always the full F_out)
    - no per-call padding: grid = cdiv(B, bb); Pallas clips the trailing partial
      block's stores, and garbage tail rows never reach HBM
    - v7x: if one block would cover the whole batch, split it in two so
      dimension_semantics=("parallel",) can shard work across both TensorCores
    """
    if B > block_b:
        return block_b
    bb = B
    if B >= 16:
        half = _round_up((B + 1) // 2, 8)
        if half < B:
            bb = half
    return bb


def attention1_forward(inputs1, inputs2, w_t, b_row, *, block_b=2048, use_pallas=None):
    """Pallas equivalent of attention1.forward.

    inputs1, inputs2: (B, 2*e_dim) f32
    w_t:              (2*e_dim, 2*e_dim) bf16, canonical (in, out) layout
    b_row:            (1, 2*e_dim) f32
    """
    B, f_in = inputs1.shape
    assert inputs2.shape == (B, f_in)
    f_in_w, f_out = w_t.shape
    assert f_in_w == f_in and b_row.shape == (1, f_out)
    assert block_b % 8 == 0

    if use_pallas is None:
        # At tiny sizes pallas_call launch/DMA setup dwarfs the work; let XLA fuse.
        use_pallas = B >= 512
    if not use_pallas:
        s = inputs1 + inputs2
        acc = jnp.dot(s.astype(w_t.dtype), w_t, preferred_element_type=jnp.float32)
        return (acc + b_row).astype(inputs1.dtype)

    bb = _pick_block_rows(B, block_b)
    grid = (pl.cdiv(B, bb),)

    in_dtype = inputs1.dtype
    itemsize = jnp.dtype(in_dtype).itemsize
    bytes_accessed = int(
        2 * B * f_in * itemsize                                    # activations in
        + w_t.size * jnp.dtype(w_t.dtype).itemsize                 # resident weight
        + b_row.size * jnp.dtype(b_row.dtype).itemsize             # resident bias
        + B * f_out * itemsize)                                    # output

    # Double-buffered per-step footprint + resident params, with headroom for the
    # in-kernel f32 temporaries; capped well under v7x's 64 MiB physical VMEM.
    step_bytes = bb * (2 * f_in + f_out) * itemsize
    resident_bytes = int(w_t.size * jnp.dtype(w_t.dtype).itemsize
                         + b_row.size * jnp.dtype(b_row.dtype).itemsize)
    vmem_limit = int(min(48 * 1024 * 1024,
                         max(2 * 1024 * 1024, 4 * (2 * step_bytes + resident_bytes))))

    out = pl.pallas_call(
        _attention1_kernel,
        out_shape=jax.ShapeDtypeStruct((B, f_out), in_dtype),
        grid=grid,
        in_specs=[
            pl.BlockSpec((bb, f_in), lambda i: (i, 0)),
            pl.BlockSpec((bb, f_in), lambda i: (i, 0)),
            pl.BlockSpec((f_in, f_out), lambda i: (0, 0)),   # weight: resident across batch tiles
            pl.BlockSpec((1, f_out), lambda i: (0, 0)),      # bias:   resident across batch tiles
        ],
        out_specs=pl.BlockSpec((bb, f_out), lambda i: (i, 0)),
        compiler_params=pltpu.CompilerParams(
            dimension_semantics=("parallel",),               # shard batch tiles across v7x's 2 TCs
            vmem_limit_bytes=vmem_limit,
        ),
        cost_estimate=pl.CostEstimate(
            flops=2 * B * f_in * f_out,
            transcendentals=0,
            bytes_accessed=bytes_accessed),
    )(inputs1, inputs2, w_t, b_row)
    return out


def _init_linear_params(key, in_features, out_features, dtype=jnp.float32):
    # Deterministic init mimicking nn.Linear default: U(-1/sqrt(in), 1/sqrt(in))
    kw, kb = jax.random.split(key)
    bound = 1.0 / (in_features ** 0.5)
    weight = jax.random.uniform(
        kw, (out_features, in_features), dtype=dtype, minval=-bound, maxval=bound)
    bias = jax.random.uniform(
        kb, (out_features,), dtype=dtype, minval=-bound, maxval=bound)
    return weight, bias


def _quantized_reference(x1, x2, weight, bias):
    # Same numerics as the kernel: bf16 operands, f32 accumulation, f32 bias add.
    s_q = (x1 + x2).astype(jnp.bfloat16).astype(jnp.float32)
    w_q = weight.astype(jnp.bfloat16).astype(jnp.float32)
    return jnp.dot(s_q, w_q.T, precision=jax.lax.Precision.HIGHEST) + bias


if __name__ == "__main__":
    e_dim = 16            # fc feature dim = e_dim * 2 = 32
    feat = e_dim * 2

    key = jax.random.PRNGKey(0)
    k1, k2, kp = jax.random.split(key, 3)

    weight, bias = _init_linear_params(kp, feat, feat)     # PyTorch (out, in) layout
    w_t, b_row = prepare_attention1_params(weight, bias)   # one-time transpose + bf16 pack

    # --- small case (module-scale demo): single block, forced Pallas path ---
    batch = 8
    inputs1 = jax.random.normal(k1, (batch, feat), dtype=jnp.float32)
    inputs2 = jax.random.normal(k2, (batch, feat), dtype=jnp.float32)
    out = attention1_forward(inputs1, inputs2, w_t, b_row, use_pallas=True)
    out = jax.block_until_ready(out)
    ref = _quantized_reference(inputs1, inputs2, weight, bias)
    assert out.shape == (batch, feat)
    assert jnp.allclose(out, ref, atol=2e-3, rtol=2e-3)

    # --- multi-block case with a partial trailing block (no jnp.pad path) ---
    batch2 = 100
    kk1, kk2 = jax.random.split(jax.random.PRNGKey(1))
    a1 = jax.random.normal(kk1, (batch2, feat), dtype=jnp.float32)
    a2 = jax.random.normal(kk2, (batch2, feat), dtype=jnp.float32)
    out2 = attention1_forward(a1, a2, w_t, b_row, block_b=32, use_pallas=True)
    out2 = jax.block_until_ready(out2)                     # grid=(4,), last block = 4 valid rows
    ref2 = _quantized_reference(a1, a2, weight, bias)
    assert out2.shape == (batch2, feat)
    assert jnp.allclose(out2, ref2, atol=2e-3, rtol=2e-3)

    print("KERNEL_OK")
</pallas_src>

<mosaic_0001>
module attributes {stable_mosaic.version = 11 : i64} {
  func.func @_attention1_kernel(%arg0: i32, %arg1: memref<8x32xf32, #tpu.memory_space<vmem>>, %arg2: memref<8x32xf32, #tpu.memory_space<vmem>>, %arg3: memref<32x32xbf16, #tpu.memory_space<vmem>>, %arg4: memref<1x32xf32, #tpu.memory_space<vmem>>, %arg5: memref<8x32xf32, #tpu.memory_space<vmem>>) attributes {dimension_semantics = [#tpu.dimension_semantics<parallel>], iteration_bounds = array<i64: 1>, scalar_prefetch = 0 : i64, scratch_operands = 0 : i64, tpu.core_type = #tpu.core_type<tc>, window_params = [{transform_indices = @transform_0, window_bounds = array<i64: 8, 32>}, {transform_indices = @transform_1, window_bounds = array<i64: 8, 32>}, {pipeline_mode = #tpu.pipeline_mode<synchronous>, transform_indices = @transform_2, window_bounds = array<i64: 32, 32>}, {pipeline_mode = #tpu.pipeline_mode<synchronous>, transform_indices = @transform_3, window_bounds = array<i64: 1, 32>}, {transform_indices = @transform_4, window_bounds = array<i64: 8, 32>}]} {
    %c0 = arith.constant 0 : index
    %c0_0 = arith.constant 0 : index
    %0 = vector.load %arg1[%c0, %c0_0] : memref<8x32xf32, #tpu.memory_space<vmem>>, vector<8x32xf32>
    %c0_1 = arith.constant 0 : index
    %c0_2 = arith.constant 0 : index
    %1 = vector.load %arg2[%c0_1, %c0_2] : memref<8x32xf32, #tpu.memory_space<vmem>>, vector<8x32xf32>
    %2 = arith.addf %0, %1 : vector<8x32xf32>
    %3 = arith.truncf %2 : vector<8x32xf32> to vector<8x32xbf16>
    %c0_3 = arith.constant 0 : index
    %c0_4 = arith.constant 0 : index
    %4 = vector.load %arg3[%c0_3, %c0_4] : memref<32x32xbf16, #tpu.memory_space<vmem>>, vector<32x32xbf16>
    %cst = arith.constant dense<0.000000e+00> : vector<8x32xf32>
    %5 = tpu.matmul %3, %4, %cst {dimension_numbers = #tpu.dot_dimension_numbers<[1], [0], [0], [1], [0, 0, 1, 1], [], []>} : vector<8x32xbf16>, vector<32x32xbf16>, vector<8x32xf32> -> vector<8x32xf32>
    %c0_5 = arith.constant 0 : index
    %c0_6 = arith.constant 0 : index
    %6 = vector.load %arg4[%c0_5, %c0_6] : memref<1x32xf32, #tpu.memory_space<vmem>>, vector<1x32xf32>
    %7 = vector.broadcast %6 : vector<1x32xf32> to vector<8x32xf32>
    %8 = arith.addf %5, %7 : vector<8x32xf32>
    %c0_7 = arith.constant 0 : index
    %c0_8 = arith.constant 0 : index
    %9 = vector.load %arg5[%c0_7, %c0_8] : memref<8x32xf32, #tpu.memory_space<vmem>>, vector<8x32xf32>
    tpu.vector_store %arg5[%c0_7, %c0_8], %8 {strides = array<i32>} : memref<8x32xf32, #tpu.memory_space<vmem>>, vector<8x32xf32>,
    return
  }
  func.func @transform_0(%arg0: i32) -> (i32, i32) {
    %c0_i32 = arith.constant 0 : i32
    %c0_i32_0 = arith.constant 0 : i32
    return %arg0, %c0_i32 : i32, i32
  }
  func.func @transform_1(%arg0: i32) -> (i32, i32) {
    %c0_i32 = arith.constant 0 : i32
    %c0_i32_0 = arith.constant 0 : i32
    return %arg0, %c0_i32 : i32, i32
  }
  func.func @transform_2(%arg0: i32) -> (i32, i32) {
    %c0_i32 = arith.constant 0 : i32
    %c0_i32_0 = arith.constant 0 : i32
    %c0_i32_1 = arith.constant 0 : i32
    return %c0_i32, %c0_i32_0 : i32, i32
  }
  func.func @transform_3(%arg0: i32) -> (i32, i32) {
    %c0_i32 = arith.constant 0 : i32
    %c0_i32_0 = arith.constant 0 : i32
    %c0_i32_1 = arith.constant 0 : i32
    return %c0_i32, %c0_i32_0 : i32, i32
  }
  func.func @transform_4(%arg0: i32) -> (i32, i32) {
    %c0_i32 = arith.constant 0 : i32
    %c0_i32_0 = arith.constant 0 : i32
    return %arg0, %c0_i32 : i32, i32
  }
}

</mosaic_0001>

<llo_original>
// kernel: tpu_custom_call.1
$region0: #{tpu_custom_call.1}
  #allocation0 [shape = 'u32[]', space=smem, size = 0x4, offset = 0x4, fixed_abs, tag = 'smem constant byte address 0x4 - core index']
  #allocation1 [shape = 'u32[144,128]{1,0:T(1,128)}', space=vmem, size = 0x12000, scoped, tag = 'internal scratch']
  %s0 = inlined_call_operand.hbm [shape: f32[8,32], index: 0, kind: input, shape index: {}]
  %s1 = inlined_call_operand.hbm [shape: f32[8,32], index: 1, kind: input, shape index: {}]
  %s2 = inlined_call_operand.hbm [shape: bf16[32,32], index: 2, kind: input, shape index: {}]
  %s3 = inlined_call_operand.vmem [shape: f32[1,32], index: 3, kind: input, shape index: {}]
  %s4 = inlined_call_operand.hbm [shape: f32[8,32], index: 4, kind: output, shape index: {}]
  %s5 = sld [smem:[#allocation0]]
  $region38: #{tpu_custom_call.1} parent=0
    _
  %s7 = ssub.s32 1, %s5
  %s8 = scalar_select 0, %s7, %s5
  $region1: #{tpu_custom_call.1} parent=0
    #allocation2 [shape = 'u8[4096]{0}', space=vmem, size = 0x1000, scoped, tag = 'input window, operand 0, single buffered']
    #allocation3 [shape = 's32[1]{0}', space=sflag, size = 0x4, scoped, tag = 'scoped memory for tpu_custom_call.1']
    #allocation4 [shape = 's32[1]{0}', space=sflag, size = 0x4, scoped, tag = 'scoped memory for tpu_custom_call.1']
    #allocation5 [shape = 'u8[4096]{0}', space=vmem, size = 0x1000, scoped, tag = 'input window, operand 1, single buffered']
    #allocation6 [shape = 's32[1]{0}', space=sflag, size = 0x4, scoped, tag = 'scoped memory for tpu_custom_call.1']
    #allocation7 [shape = 'u8[8192]{0}', space=vmem, size = 0x2000, scoped, tag = 'input window, operand 2, single buffered']
    #allocation8 [shape = 'u8[4096]{0}', space=vmem, size = 0x1000, scoped, tag = 'output window, operand 0, single buffered']
    %9 = vsyncpa [#allocation3], 0
    %10 = vsyncpa [#allocation6], 0
    %11 = vsyncpa [#allocation4], 0
    // Predicated region
    $region2: #{tpu_custom_call.1} parent=1 // pred_check
      _
    $region3: #{tpu_custom_call.1} parent=1 // pred_check_branch
      %13 = sbr.rel (0) target = $region5
    $region4: #{tpu_custom_call.1} parent=1 // pred_region
      %s15 = ssub.s32 128, 128
      %16 = vsyncadd [#allocation3], %s15
      %s18 = sshll.u32 [#allocation2], 4
      %s19 = int_to_ptr.vmem [resolvable:$true] %s18
      %21 = dma.hbm_to_vmem [thread:$0]  %s0, 128, %s19, [#allocation3]
    $region5: #{tpu_custom_call.1} parent=1 // pred_fallthru
      _
    // Predicated region
    $region6: #{tpu_custom_call.1} parent=1 // pred_check
      _
    $region7: #{tpu_custom_call.1} parent=1 // pred_check_branch
      %23 = sbr.rel (0) target = $region9
    $region8: #{tpu_custom_call.1} parent=1 // pred_region
      %s25 = ssub.s32 128, 128
      %26 = vsyncadd [#allocation6], %s25
      %s28 = sshll.u32 [#allocation5], 4
      %s29 = int_to_ptr.vmem [resolvable:$true] %s28
      %31 = dma.hbm_to_vmem [thread:$0]  %s1, 128, %s29, [#allocation6]
    $region9: #{tpu_custom_call.1} parent=1 // pred_fallthru
      _
    // Predicated region
    $region10: #{tpu_custom_call.1} parent=1 // pred_check
      _
    $region11: #{tpu_custom_call.1} parent=1 // pred_check_branch
      %33 = sbr.rel (0) target = $region13
    $region12: #{tpu_custom_call.1} parent=1 // pred_region
      %s35 = ssub.s32 256, 256
      %36 = vsyncadd [#allocation6], %s35
      %s37 = sshll.u32 [#allocation7], 4
      %s38 = int_to_ptr.vmem [resolvable:$true] %s37
      %43 = dma.hbm_to_vmem [thread:$0]  %s2, 256, %s38, [#allocation6], 64, 64, 4
    $region13: #{tpu_custom_call.1} parent=1 // pred_fallthru
      _
    // Predicated region
    $region14: #{tpu_custom_call.1} parent=1 // pred_check
      _
    $region15: #{tpu_custom_call.1} parent=1 // pred_check_branch
      %45 = sbr.rel (0) target = $region17
    $region16: #{tpu_custom_call.1} parent=1 // pred_region
      _
    $region17: #{tpu_custom_call.1} parent=1 // pred_fallthru
      _
    // Predicated region
    $region18: #{tpu_custom_call.1} parent=1 // pred_check
      _
    $region19: #{tpu_custom_call.1} parent=1 // pred_check_branch
      %47 = sbr.rel (0) target = $region21
    $region20: #{tpu_custom_call.1} parent=1 // pred_region
      %48 = dma.done [#allocation3], 128
    $region21: #{tpu_custom_call.1} parent=1 // pred_fallthru
      _
    // Predicated region
    $region22: #{tpu_custom_call.1} parent=1 // pred_check
      _
    $region23: #{tpu_custom_call.1} parent=1 // pred_check_branch
      %50 = sbr.rel (0) target = $region25
    $region24: #{tpu_custom_call.1} parent=1 // pred_region
      %51 = dma.done [#allocation6], 128
    $region25: #{tpu_custom_call.1} parent=1 // pred_fallthru
      _
    // Predicated region
    $region26: #{tpu_custom_call.1} parent=1 // pred_check
      _
    $region27: #{tpu_custom_call.1} parent=1 // pred_check_branch
      %53 = sbr.rel (0) target = $region29
    $region28: #{tpu_custom_call.1} parent=1 // pred_region
      %54 = dma.done [#allocation6], 256
    $region29: #{tpu_custom_call.1} parent=1 // pred_fallthru
      _
    %v56 = vld [vmem:[#allocation2] sm:$0xff]
    %v57 = vld [vmem:[#allocation5] sm:$0xff]
    %v58 = vadd.f32 %v56, %v57
    %v59 = vpack.c.bf16 %v58, %v58
    %v60 = vld [vmem:[#allocation7] sm:$0xf]
    %v61 = vld [vmem:[#allocation7 + $0x4] sm:$0xf]
    %v62 = vld [vmem:[#allocation7 + $0x8] sm:$0xf]
    %v63 = vld [vmem:[#allocation7 + $0xc] sm:$0xf]
    %v64 = vld [vmem:[%s3] sm:$0x1]
    %v66 = vlaneseq
    %v67 = vshrl.u32 %v66, 7
    %v68 = vsub.s32 0, %v67
    %v69 = vrot.slane %v64, %v68
    %v75 = vunpack.c.l.b16 %v60
    %v76 = vunpack.c.l.b16 %v61
    %v77 = vunpack.c.l.b16 %v62
    %v78 = vunpack.c.l.b16 %v63
    %v79 = vpack.c.b16 %v76, %v75
    %v80 = vpack.c.b16 %v78, %v77
    %vm83 = vcmask 261120
    %v85 = vsel %vm83, %v59, 0
    %87 = vmatprep.subr.bf16.mxu0 0
    %88 = vmatpush1.bf16.msra.mxu0 0
    %89 = vmatprep.subr.bf16.mxu0 0
    %90 = vmatpush1.bf16.msra.mxu0 0
    %91 = vmatprep.subr.bf16.mxu0 0
    %92 = vmatpush1.bf16.msra.mxu0 0
    %93 = vmatprep.subr.bf16.mxu0 0
    %94 = vmatpush1.bf16.msra.mxu0 0
    %95 = vmatprep.subr.bf16.mxu0 0
    %96 = vmatpush1.bf16.msra.mxu0 0
    %97 = vmatprep.subr.bf16.mxu0 0
    %98 = vmatpush1.bf16.msra.mxu0 0
    %99 = vmatprep.subr.bf16.mxu0 0
    %100 = vmatpush1.bf16.msra.mxu0 %v80
    %101 = vmatprep.subr.bf16.mxu0 0
    %102 = vmatpush1.bf16.msra.mxu0 %v79
    %103 = vmatprep.subr.bf16.mxu0 0
    %104 = vmatpush2.bf16.msra.mxu0 0
    %105 = vmatprep.subr.bf16.mxu0 0
    %106 = vmatpush2.bf16.msra.mxu0 0
    %107 = vmatprep.subr.bf16.mxu0 0
    %108 = vmatpush2.bf16.msra.mxu0 0
    %109 = vmatprep.subr.bf16.mxu0 0
    %110 = vmatpush2.bf16.msra.mxu0 0
    %111 = vmatprep.subr.bf16.mxu0 0
    %112 = vmatpush2.bf16.msra.mxu0 0
    %113 = vmatprep.subr.bf16.mxu0 0
    %114 = vmatpush2.bf16.msra.mxu0 0
    %115 = vmatprep.subr.bf16.mxu0 0
    %116 = vmatpush2.bf16.msra.mxu0 0
    %117 = vmatprep.subr.bf16.mxu0 0
    %118 = vmatpush2.bf16.msra.mxu0 0
    %119 = vmatprep.mubr.bf16.mxu0 0
    %120 = vmatmul.mubr.bf16.gmra.mxu0 %v85
    %v121 = vpop.f32.mrf.mxu0
    %v122 = vadd.f32 %v69, %v121
    %v123 = vpop.f32.mrf.mxu0
    %v124 = vpop.f32.mrf.mxu0
    %v125 = vpop.f32.mrf.mxu0
    %126 = vdwg.mxu0
    %127 = vst.msk [vmem:[#allocation8] sm:$0xff] %vm83, %v122
    // Predicated region
    $region30: #{tpu_custom_call.1} parent=1 // pred_check
      _
    $region31: #{tpu_custom_call.1} parent=1 // pred_check_branch
      %129 = sbr.rel (0) target = $region33
    $region32: #{tpu_custom_call.1} parent=1 // pred_region
      %s131 = ssub.s32 128, 128
      %132 = vsyncadd [#allocation4], %s131
      %s134 = sshll.u32 [#allocation8], 4
      %s135 = int_to_ptr.vmem [resolvable:$true] %s134
      %137 = dma.vmem_to_hbm [thread:$0]  %s135, 128, %s4, [#allocation4]
    $region33: #{tpu_custom_call.1} parent=1 // pred_fallthru
      _
    // Predicated region
    $region34: #{tpu_custom_call.1} parent=1 // pred_check
      _
    $region35: #{tpu_custom_call.1} parent=1 // pred_check_branch
      %139 = sbr.rel (0) target = $region37
    $region36: #{tpu_custom_call.1} parent=1 // pred_region
      %140 = dma.done [#allocation4], 128
    $region37: #{tpu_custom_call.1} parent=1 // pred_fallthru
      _
    %141 = vsyncpa [#allocation3], 1
    %142 = vsyncpa [#allocation6], 1
    %143 = vsyncpa [#allocation4], 1

</llo_original>
